<compile_context>
chip_gen: v6e
topology: v6e:2x2x1
jax: 0.10.0
libtpu: 0.0.40
codegen_flags: <defaults>
</compile_context>

<pallas_src>
import jax
import jax.numpy as jnp
from jax.experimental import pallas as pl
from jax.experimental.pallas import tpu as pltpu


def _round_up(v, m):
    return ((v + m - 1) // m) * m


def _sublane_min(dtype):
    return {4: 8, 2: 16, 1: 32}.get(jnp.dtype(dtype).itemsize, 8)


def _vmem_budget_and_limit():
    """Generation-aware (tile-selection budget, vmem_limit_bytes)."""
    cap = None
    try:
        cap = getattr(pltpu.get_tpu_info(), "vmem_capacity_bytes", None)
    except Exception:
        cap = None
    if cap is None or cap <= 64 * 1024 * 1024:
        # Unknown chip or v7x (64 MiB per TC): leave headroom for Mosaic
        # internal scratch / semaphores.
        return 32 * 1024 * 1024, 44 * 1024 * 1024
    # v5e / v6e: 128 MiB physical VMEM -> grow tiles into it.
    return 88 * 1024 * 1024, 100 * 1024 * 1024


def _vmem_bytes(tm, tn, tk, x_isz, w_isz, o_isz, acc_in_out):
    """Rough double-buffered VMEM footprint of one grid step."""
    xb = 2 * tm * tk * x_isz            # activation tile
    wb = 2 * tk * tn * w_isz            # fused weight tile
    bb = 2 * 8 * tn * w_isz             # bias row (padded to 8 sublanes)
    ob = 2 * tm * tn * o_isz            # output tile
    ab = 0 if acc_in_out else tm * tn * 4
    return xb + wb + bb + ob + ab


# ---------------------------------------------------------------------------
# Kernels: one wide matmul per grid step over the fused (E * N_p) output dim.
# ---------------------------------------------------------------------------
def _fused_kernel_acc_in_out(x_ref, w_ref, b_ref, o_ref):
    # o_ref is f32 and resident across the (innermost) K axis -> accumulate
    # directly into it; the bias initialises the accumulator (added once).
    k = pl.program_id(2)

    @pl.when(k == 0)
    def _init():
        o_ref[...] = jnp.broadcast_to(
            b_ref[...].astype(o_ref.dtype), o_ref.shape)

    o_ref[...] += jnp.dot(x_ref[...], w_ref[...],
                          preferred_element_type=jnp.float32)


def _fused_kernel_scratch(x_ref, w_ref, b_ref, o_ref, acc_ref):
    # Non-f32 output: accumulate in an f32 scratch, cast/store at k == last.
    k = pl.program_id(2)

    @pl.when(k == 0)
    def _init():
        acc_ref[...] = jnp.broadcast_to(
            b_ref[...].astype(jnp.float32), acc_ref.shape)

    acc_ref[...] += jnp.dot(x_ref[...], w_ref[...],
                            preferred_element_type=jnp.float32)

    @pl.when(k == pl.num_programs(2) - 1)
    def _store():
        o_ref[...] = acc_ref[...].astype(o_ref.dtype)


# ---------------------------------------------------------------------------
# One-time weight packing (do NOT re-run per forward call).
# ---------------------------------------------------------------------------
def pack_ensemble_params(W, b, compute_dtype=None):
    """Pad + fuse ensemble weights once.

    W: (E, D_in, D_out), b: (E, 1, D_out)
    Returns a dict with Wf: (K_p, E*N_p), bf: (1, E*N_p) and metadata.
    """
    E, D_in, D_out = W.shape
    if compute_dtype is not None:
        W = W.astype(compute_dtype)
        b = b.astype(compute_dtype)

    K_p = _round_up(D_in, 128)
    N_p = _round_up(D_out, 128)

    Wp = W
    if (K_p, N_p) != (D_in, D_out):
        Wp = jnp.pad(W, ((0, 0), (0, K_p - D_in), (0, N_p - D_out)))
    bp = b.reshape(E, D_out)
    if N_p != D_out:
        bp = jnp.pad(bp, ((0, 0), (0, N_p - D_out)))

    # (E, K_p, N_p) -> (K_p, E, N_p) -> (K_p, E*N_p): member e occupies output
    # columns [e*N_p, (e+1)*N_p).
    Wf = jnp.transpose(Wp, (1, 0, 2)).reshape(K_p, E * N_p)
    bf = bp.reshape(1, E * N_p)

    return {"w": Wf, "b": bf, "E": E, "d_in": D_in, "d_out": D_out,
            "k_pad": K_p, "n_pad": N_p}


# ---------------------------------------------------------------------------
# Forward pass.
# ---------------------------------------------------------------------------
def ensemble_linear_forward(x, packed):
    """Ensemble forward: same input fed to every linear member.

    x: (..., D_in) shared input;  packed: result of pack_ensemble_params.
    returns: (E, ..., D_out)
    """
    Wf, bf = packed["w"], packed["b"]
    E, D_in, D_out = packed["E"], packed["d_in"], packed["d_out"]
    K_p, N_p = packed["k_pad"], packed["n_pad"]
    NW = E * N_p

    lead = x.shape[:-1]
    out_dtype = x.dtype
    x2 = x.reshape(-1, D_in)
    B = x2.shape[0]

    comp_dtype = Wf.dtype
    if x2.dtype != comp_dtype:
        x2 = x2.astype(comp_dtype)

    x_isz = jnp.dtype(comp_dtype).itemsize
    w_isz = jnp.dtype(Wf.dtype).itemsize
    o_isz = jnp.dtype(out_dtype).itemsize
    acc_in_out = (jnp.dtype(out_dtype) == jnp.dtype(jnp.float32))

    budget, vmem_limit = _vmem_budget_and_limit()
    sub = _sublane_min(comp_dtype)

    # ---- lane-dense tile sizes --------------------------------------------
    tk = next(t for t in (512, 256, 128) if K_p % t == 0)
    tn = next(t for t in (512, 256, 128) if NW % t == 0)

    # tm: prefer one M tile over the whole batch (weight HBM traffic = 1x),
    # otherwise snap down to {2048, 1024, 512, 256, 128}.
    tm_full = _round_up(max(B, sub), sub)
    tm = None
    for cand in [tm_full] + [c for c in (2048, 1024, 512, 256, 128)
                             if c < tm_full]:
        if cand % sub != 0:
            continue
        if _vmem_bytes(cand, tn, tk, x_isz, w_isz, o_isz,
                       acc_in_out) <= budget:
            tm = cand
            break
    if tm is None:                       # minimal lane-dense fallback
        tk, tn = 128, 128
        tm = 128 if tm_full >= 128 else tm_full
    B_p = _round_up(B, tm)

    # Degenerate-grid guard (v7x megacore): keep >= 2 parallel steps when
    # the whole problem fits a single (M, N) tile.
    if (B_p // tm) * (NW // tn) == 1 and tn >= 256:
        tn //= 2

    # ---- pad activations only (weights were packed once at init) ----------
    x_p = x2
    if (B_p, K_p) != x2.shape:
        x_p = jnp.pad(x2, ((0, B_p - B), (0, K_p - D_in)))

    grid = (B_p // tm, NW // tn, K_p // tk)

    kernel = _fused_kernel_acc_in_out if acc_in_out else _fused_kernel_scratch
    scratch = () if acc_in_out else (pltpu.VMEM((tm, tn), jnp.float32),)

    cost = pl.CostEstimate(
        flops=2 * B_p * K_p * NW,
        transcendentals=0,
        bytes_accessed=int(x_p.nbytes * (NW // tn)
                           + Wf.nbytes * (B_p // tm)
                           + bf.nbytes + B_p * NW * o_isz),
    )

    out_p = pl.pallas_call(
        kernel,
        out_shape=jax.ShapeDtypeStruct((B_p, NW), out_dtype),
        grid_spec=pltpu.PrefetchScalarGridSpec(
            num_scalar_prefetch=0,
            grid=grid,
            in_specs=[
                pl.BlockSpec((tm, tk), lambda m, n, k: (m, k)),   # activations
                pl.BlockSpec((tk, tn), lambda m, n, k: (k, n)),   # fused W
                pl.BlockSpec((1, tn), lambda m, n, k: (0, n)),    # fused bias
            ],
            out_specs=pl.BlockSpec((tm, tn), lambda m, n, k: (m, n)),
            scratch_shapes=scratch,
        ),
        compiler_params=pltpu.CompilerParams(
            dimension_semantics=("parallel", "parallel", "arbitrary"),
            vmem_limit_bytes=vmem_limit,
        ),
        cost_estimate=cost,
    )(x_p, Wf, bf)

    # Un-interleave members: (B, E*N_p) -> (E, B, D_out); output is small
    # (E*B*D_out) relative to the weight stream, so this reshape is cheap.
    out = out_p[:B].reshape(B, E, N_p)[:, :, :D_out]
    out = jnp.moveaxis(out, 1, 0)
    return out.reshape((E,) + lead + (D_out,))


def init_ensemble_linear(key, ensemble_size, input_dim, output_dim,
                         w_std_value=1.0, b_init_value=0.0):
    """Deterministic init matching the PyTorch members' __init__ semantics."""
    k_w, _ = jax.random.split(key)
    w = jax.random.normal(k_w, (ensemble_size, input_dim, output_dim),
                          dtype=jnp.float32)
    w = jnp.fmod(w, 2.0) * w_std_value          # torch.fmod(randn, 2) * w_std
    b = jnp.zeros((ensemble_size, 1, output_dim),
                  dtype=jnp.float32) + b_init_value
    return w, b


if __name__ == "__main__":
    key = jax.random.PRNGKey(0)
    k_w, k_b, k_x = jax.random.split(key, 3)

    ensemble_size, batch, input_dim, output_dim = 4, 8, 32, 16

    W, b = init_ensemble_linear(k_w, ensemble_size, input_dim, output_dim,
                                w_std_value=1.0, b_init_value=0.0)
    # give the bias a nonzero value so the bias path is actually tested
    b = b + 0.1 * jnp.fmod(
        jax.random.normal(k_b, b.shape, dtype=jnp.float32), 2.0)

    x = jax.random.normal(k_x, (batch, input_dim), dtype=jnp.float32)

    packed = pack_ensemble_params(W, b)          # one-time weight layout
    out = ensemble_linear_forward(x, packed)
    out = jax.block_until_ready(out)

    # Reference: every ensemble member applied to the SAME input
    # (Ensemble.forward semantics).
    ref = jnp.einsum("bi,eio->ebo", x, W) + b
    assert out.shape == (ensemble_size, batch, output_dim)
    assert jnp.allclose(out, ref, atol=1e-5, rtol=1e-5)

    print("KERNEL_OK")
</pallas_src>

<mosaic_0001>
module attributes {stable_mosaic.version = 11 : i64} {
  func.func @_fused_kernel_acc_in_out(%arg0: i32, %arg1: i32, %arg2: i32, %arg3: memref<8x128xf32, #tpu.memory_space<vmem>>, %arg4: memref<128x256xf32, #tpu.memory_space<vmem>>, %arg5: memref<1x256xf32, #tpu.memory_space<vmem>>, %arg6: memref<8x256xf32, #tpu.memory_space<vmem>>) attributes {dimension_semantics = [#tpu.dimension_semantics<parallel>, #tpu.dimension_semantics<parallel>, #tpu.dimension_semantics<arbitrary>], iteration_bounds = array<i64: 1, 2, 1>, scalar_prefetch = 0 : i64, scratch_operands = 0 : i64, tpu.core_type = #tpu.core_type<tc>, window_params = [{transform_indices = @transform_0, window_bounds = array<i64: 8, 128>}, {transform_indices = @transform_1, window_bounds = array<i64: 128, 256>}, {transform_indices = @transform_2, window_bounds = array<i64: 1, 256>}, {transform_indices = @transform_3, window_bounds = array<i64: 8, 256>}]} {
    %c0_i32 = arith.constant 0 : i32
    %0 = arith.cmpi eq, %arg2, %c0_i32 : i32
    %1 = arith.extui %0 : i1 to i32
    %c0_i32_0 = arith.constant 0 : i32
    %2 = arith.cmpi ne, %1, %c0_i32_0 : i32
    scf.if %2 {
      %c0_8 = arith.constant 0 : index
      %c0_9 = arith.constant 0 : index
      %9 = vector.load %arg5[%c0_8, %c0_9] : memref<1x256xf32, #tpu.memory_space<vmem>>, vector<1x256xf32>
      %10 = vector.shape_cast %9 : vector<1x256xf32> to vector<1x256xf32>
      %11 = vector.broadcast %10 : vector<1x256xf32> to vector<8x256xf32>
      %c0_10 = arith.constant 0 : index
      %c0_11 = arith.constant 0 : index
      %12 = vector.load %arg6[%c0_10, %c0_11] : memref<8x256xf32, #tpu.memory_space<vmem>>, vector<8x256xf32>
      tpu.vector_store %arg6[%c0_10, %c0_11], %11 {strides = array<i32>} : memref<8x256xf32, #tpu.memory_space<vmem>>, vector<8x256xf32>,
    } else {
    }
    %c0 = arith.constant 0 : index
    %c0_1 = arith.constant 0 : index
    %3 = vector.load %arg6[%c0, %c0_1] : memref<8x256xf32, #tpu.memory_space<vmem>>, vector<8x256xf32>
    %c0_2 = arith.constant 0 : index
    %c0_3 = arith.constant 0 : index
    %4 = vector.load %arg3[%c0_2, %c0_3] : memref<8x128xf32, #tpu.memory_space<vmem>>, vector<8x128xf32>
    %c0_4 = arith.constant 0 : index
    %c0_5 = arith.constant 0 : index
    %5 = vector.load %arg4[%c0_4, %c0_5] : memref<128x256xf32, #tpu.memory_space<vmem>>, vector<128x256xf32>
    %cst = arith.constant dense<0.000000e+00> : vector<8x256xf32>
    %6 = tpu.matmul %4, %5, %cst {dimension_numbers = #tpu.dot_dimension_numbers<[1], [0], [0], [1], [0, 0, 1, 1], [], []>} : vector<8x128xf32>, vector<128x256xf32>, vector<8x256xf32> -> vector<8x256xf32>
    %7 = arith.addf %3, %6 : vector<8x256xf32>
    %c0_6 = arith.constant 0 : index
    %c0_7 = arith.constant 0 : index
    %8 = vector.load %arg6[%c0_6, %c0_7] : memref<8x256xf32, #tpu.memory_space<vmem>>, vector<8x256xf32>
    tpu.vector_store %arg6[%c0_6, %c0_7], %7 {strides = array<i32>} : memref<8x256xf32, #tpu.memory_space<vmem>>, vector<8x256xf32>,
    return
  }
  func.func @transform_0(%arg0: i32, %arg1: i32, %arg2: i32) -> (i32, i32) {
    %c0_i32 = arith.constant 0 : i32
    return %arg0, %arg2 : i32, i32
  }
  func.func @transform_1(%arg0: i32, %arg1: i32, %arg2: i32) -> (i32, i32) {
    %c0_i32 = arith.constant 0 : i32
    return %arg2, %arg1 : i32, i32
  }
  func.func @transform_2(%arg0: i32, %arg1: i32, %arg2: i32) -> (i32, i32) {
    %c0_i32 = arith.constant 0 : i32
    %c0_i32_0 = arith.constant 0 : i32
    return %c0_i32, %arg1 : i32, i32
  }
  func.func @transform_3(%arg0: i32, %arg1: i32, %arg2: i32) -> (i32, i32) {
    %c0_i32 = arith.constant 0 : i32
    return %arg0, %arg1 : i32, i32
  }
}

</mosaic_0001>

<llo_original>
// kernel: tpu_custom_call.1
$region0: #{tpu_custom_call.1}
  #allocation0 [shape = 'u32[]', space=smem, size = 0x4, offset = 0x4, fixed_abs, tag = 'smem constant byte address 0x4 - core index']
  #allocation1 [shape = 'u32[144,128]{1,0:T(1,128)}', space=vmem, size = 0x12000, scoped, tag = 'internal scratch']
  %s0 = inlined_call_operand.hbm [shape: f32[8,128], index: 0, kind: input, shape index: {}]
  %s1 = inlined_call_operand.hbm [shape: f32[128,512], index: 1, kind: input, shape index: {}]
  %s2 = inlined_call_operand.hbm [shape: f32[1,512], index: 2, kind: input, shape index: {}]
  %s3 = inlined_call_operand.hbm [shape: f32[8,512], index: 3, kind: output, shape index: {}]
  %s4 = sld [smem:[#allocation0]]
  $region61: #{tpu_custom_call.1} parent=0
    _
  %s6 = ssub.s32 1, %s4
  %s7 = scalar_select 0, %s6, %s4
  $region1: #{tpu_custom_call.1} parent=0
    #allocation2 [shape = 'u8[4096]{0}', space=vmem, size = 0x1000, scoped, tag = 'input window, operand 0, single buffered']
    #allocation3 [shape = 's32[2]{0}', space=sflag, size = 0x8, scoped, tag = 'scoped memory for tpu_custom_call.1']
    #allocation4 [shape = 's32[2]{0}', space=sflag, size = 0x8, scoped, tag = 'scoped memory for tpu_custom_call.1']
    #allocation5 [shape = 'u8[262144]{0}', space=vmem, size = 0x40000, scoped, tag = 'input window, operand 1']
    #allocation6 [shape = 's32[2]{0}', space=sflag, size = 0x8, scoped, tag = 'scoped memory for tpu_custom_call.1']
    #allocation7 [shape = 'u8[2048]{0}', space=vmem, size = 0x800, scoped, tag = 'input window, operand 2']
    #allocation8 [shape = 'u8[16384]{0}', space=vmem, size = 0x4000, scoped, tag = 'output window, operand 0']
    %8 = vsyncpa [#allocation3], 0
    %9 = vsyncpa [#allocation6], 0
    %s10 = scalar_lea.sflag [#allocation6], 1
    %11 = vsyncpa %s10, 0
    %12 = vsyncpa [#allocation4], 0
    %s13 = scalar_lea.sflag [#allocation4], 1
    %14 = vsyncpa %s13, 0
    loop: start=0, step=1, limit=4
    $region2: #{tpu_custom_call.1} parent=1 // loop_pre_header
      _
    $region3: #{tpu_custom_call.1} parent=1 // loop_header
      %s16 = sphi 0, %s20
      %p17 = scmp.ge.s32.totalorder %s16, 4
      %s23 = sphi 0, %s42
      %s24 = sphi 0, %s38
      %s25 = sphi 0, %s34
      %s26 = sphi 0, %s23
      %s27 = sphi 0, %s24
      %s28 = sphi 0, %s25
      %s29 = sphi 0, %s26
      %s30 = sphi 0, %s27
      %s31 = sphi 0, %s28
      %s47 = sphi 0, %s49
      %s50 = sphi 0, %s47
      %s51 = sphi 0, %s50
      %s67 = sphi 0, %s51
      %s75 = sphi 0, %s77
      %s78 = sphi 0, %s75
      %s79 = sphi 0, %s78
      %s95 = sphi 0, %s79
      %s101 = sphi 0, %s103
      %s104 = sphi 0, %s101
      %s105 = sphi 0, %s104
      %s121 = sphi 0, %s105
      %s129 = sphi 0, %s131
      %s132 = sphi 0, %s129
      %s133 = sphi 0, %s132
      %s149 = sphi 0, %s133
    $region4: #{tpu_custom_call.1} parent=1 // loop_header_branch
      %19 = sbr.rel (%p17) target = $region8
    $region5: #{tpu_custom_call.1} parent=1 // loop_body
      %s21 = ssub.s32 %s16, 1
      %s22 = ssub.s32 %s16, 2
      %s32 = sadd.s32 1, %s25
      %p33 = scmp.ge.s32.totalorder %s32, 1
      %s34 = scalar_select %p33, 0, %s32
      %s35 = sadd.s32 1, %s24
      %s36 = scalar_select %p33, %s35, %s24
      %p37 = scmp.ge.s32.totalorder %s36, 2
      %s38 = scalar_select %p37, 0, %s36
      %s39 = sadd.s32 1, %s23
      %s40 = scalar_select %p37, %s39, %s23
      %p41 = scmp.ge.s32.totalorder %s40, 1
      %s42 = scalar_select %p41, 0, %s40
      %s43 = ssub.s32 %s23, %s42
      %s44 = ssub.s32 %s25, %s34
      %s45 = sor.u32 %s43, %s44
      %p46 = scmp.eq.s32.totalorder %s45, 0
      %s48 = sadd.s32 %s47, 1
      %s49 = scalar_select %p46, %s47, %s48
      %p52 = pneg %p46
      %p53 = scmp.eq.s32.totalorder %s16, 1
      %p54 = por %p52, %p53
      %p55 = scmp.ne.s32.totalorder %s47, %s50
      %p56 = scmp.eq.s32.totalorder %s16, 0
      %p57 = por %p55, %p56
      %p58 = scmp.ne.s32.totalorder %s47, %s50
      %p59 = scmp.eq.s32.totalorder %s21, 1
      %p60 = por %p58, %p59
      %p61 = scmp.ne.s32.totalorder %s50, %s51
      %p62 = scmp.eq.s32.totalorder %s21, 0
      %p63 = por %p61, %p62
      %p64 = scmp.ne.s32.totalorder %s50, %s51
      %p65 = scmp.eq.s32.totalorder %s22, 1
      %p66 = por %p64, %p65
      %p68 = scmp.ne.s32.totalorder %s51, %s67
      %p69 = scmp.eq.s32.totalorder %s22, 0
      %p70 = por %p68, %p69
      %s71 = ssub.s32 %s25, %s34
      %s72 = ssub.s32 %s24, %s38
      %s73 = sor.u32 %s71, %s72
      %p74 = scmp.eq.s32.totalorder %s73, 0
      %s76 = sadd.s32 %s75, 1
      %s77 = scalar_select %p74, %s75, %s76
      %p80 = pneg %p74
      %p81 = scmp.eq.s32.totalorder %s16, 1
      %p82 = por %p80, %p81
      %p83 = scmp.ne.s32.totalorder %s75, %s78
      %p84 = scmp.eq.s32.totalorder %s16, 0
      %p85 = por %p83, %p84
      %p86 = scmp.ne.s32.totalorder %s75, %s78
      %p87 = scmp.eq.s32.totalorder %s21, 1
      %p88 = por %p86, %p87
      %p89 = scmp.ne.s32.totalorder %s78, %s79
      %p90 = scmp.eq.s32.totalorder %s21, 0
      %p91 = por %p89, %p90
      %p92 = scmp.ne.s32.totalorder %s78, %s79
      %p93 = scmp.eq.s32.totalorder %s22, 1
      %p94 = por %p92, %p93
      %p96 = scmp.ne.s32.totalorder %s79, %s95
      %p97 = scmp.eq.s32.totalorder %s22, 0
      %p98 = por %p96, %p97
      %s99 = ssub.s32 %s24, %s38
      %p100 = scmp.eq.s32.totalorder %s99, 0
      %s102 = sadd.s32 %s101, 1
      %s103 = scalar_select %p100, %s101, %s102
      %p106 = pneg %p100
      %p107 = scmp.eq.s32.totalorder %s16, 1
      %p108 = por %p106, %p107
      %p109 = scmp.ne.s32.totalorder %s101, %s104
      %p110 = scmp.eq.s32.totalorder %s16, 0
      %p111 = por %p109, %p110
      %p112 = scmp.ne.s32.totalorder %s101, %s104
      %p113 = scmp.eq.s32.totalorder %s21, 1
      %p114 = por %p112, %p113
      %p115 = scmp.ne.s32.totalorder %s104, %s105
      %p116 = scmp.eq.s32.totalorder %s21, 0
      %p117 = por %p115, %p116
      %p118 = scmp.ne.s32.totalorder %s104, %s105
      %p119 = scmp.eq.s32.totalorder %s22, 1
      %p120 = por %p118, %p119
      %p122 = scmp.ne.s32.totalorder %s105, %s121
      %p123 = scmp.eq.s32.totalorder %s22, 0
      %p124 = por %p122, %p123
      %s125 = ssub.s32 %s23, %s42
      %s126 = ssub.s32 %s24, %s38
      %s127 = sor.u32 %s125, %s126
      %p128 = scmp.eq.s32.totalorder %s127, 0
      %s130 = sadd.s32 %s129, 1
      %s131 = scalar_select %p128, %s129, %s130
      %p134 = pneg %p128
      %p135 = scmp.eq.s32.totalorder %s16, 1
      %p136 = por %p134, %p135
      %p137 = scmp.ne.s32.totalorder %s129, %s132
      %p138 = scmp.eq.s32.totalorder %s16, 0
      %p139 = por %p137, %p138
      %p140 = scmp.ne.s32.totalorder %s129, %s132
      %p141 = scmp.eq.s32.totalorder %s21, 1
      %p142 = por %p140, %p141
      %p143 = scmp.ne.s32.totalorder %s132, %s133
      %p144 = scmp.eq.s32.totalorder %s21, 0
      %p145 = por %p143, %p144
      %p146 = scmp.ne.s32.totalorder %s132, %s133
      %p147 = scmp.eq.s32.totalorder %s22, 1
      %p148 = por %p146, %p147
      %p150 = scmp.ne.s32.totalorder %s133, %s149
      %p151 = scmp.eq.s32.totalorder %s22, 0
      %p152 = por %p150, %p151
      %p153 = scmp.le.s32.totalorder 1, %s16
      %p154 = scmp.lt.s32.totalorder %s16, 3
      %p155 = pnand %p153, %p154
      %p156 = pneg %p155
      // Predicated region
      $region9: #{tpu_custom_call.1} parent=5 // pred_check
        _
      $region10: #{tpu_custom_call.1} parent=5 // pred_check_branch
        %158 = sbr.rel (%p155) target = $region12
      $region11: #{tpu_custom_call.1} parent=5 // pred_region
        %s159 = ssub.s32 %s16, 1
        // Predicated region
        $region13: #{tpu_custom_call.1} parent=11 // pred_check
          %p160 = pneg %p63
        $region14: #{tpu_custom_call.1} parent=11 // pred_check_branch
          %162 = sbr.rel (%p160) target = $region16
        $region15: #{tpu_custom_call.1} parent=11 // pred_region
          %s164 = ssub.s32 128, 128
          %165 = vsyncadd [#allocation3], %s164
          %s166 = sadd.s32 %s28, %s26
          %s167 = smul.addr %s166, 128
          %s168 = scalar_lea.hbm %s0, %s167
          %s170 = sshll.u32 [#allocation2], 4
          %s171 = int_to_ptr.vmem [resolvable:$true] %s170
          %173 = dma.hbm_to_vmem [thread:$0]  %s168, 128, %s171, [#allocation3]
        $region16: #{tpu_custom_call.1} parent=11 // pred_fallthru
          _
      $region12: #{tpu_custom_call.1} parent=5 // pred_fallthru
        _
      %p174 = scmp.lt.s32.totalorder %s16, 2
      // Predicated region
      $region17: #{tpu_custom_call.1} parent=5 // pred_check
        %p175 = pneg %p174
      $region18: #{tpu_custom_call.1} parent=5 // pred_check_branch
        %177 = sbr.rel (%p175) target = $region20
      $region19: #{tpu_custom_call.1} parent=5 // pred_region
        // Predicated region
        $region21: #{tpu_custom_call.1} parent=19 // pred_check
          %p178 = pneg %p85
        $region22: #{tpu_custom_call.1} parent=19 // pred_check_branch
          %180 = sbr.rel (%p178) target = $region24
        $region23: #{tpu_custom_call.1} parent=19 // pred_region
          %s181 = sand.u32 %s16, 1
          %s182 = scalar_lea.sflag [#allocation6], %s181
          %s183 = sand.u32 %s75, 1
          %s184 = smul.addr %s183, 256
          %s185 = scalar_lea.vmem [#allocation5], %s184
          %s186 = smul.u32 16, %s25
          %s187 = smul.u32 2, %s24
          %s189 = ssub.s32 4096, 4096
          %190 = vsyncadd %s182, %s189
          %s191 = smul.addr %s186, 4
          %s192 = sadd.s32 %s187, %s191
          %s193 = smul.addr %s192, 128
          %s194 = scalar_lea.hbm %s1, %s193
          %s195 = sshll.u32 %s185, 4
          %s196 = int_to_ptr.vmem [resolvable:$true] %s195
          %201 = dma.hbm_to_vmem [thread:$0]  %s194, 4096, %s196, %s182, 512, 256, 16
        $region24: #{tpu_custom_call.1} parent=19 // pred_fallthru
          _
        // Predicated region
        $region25: #{tpu_custom_call.1} parent=19 // pred_check
          %p202 = pneg %p111
        $region26: #{tpu_custom_call.1} parent=19 // pred_check_branch
          %204 = sbr.rel (%p202) target = $region28
        $region27: #{tpu_custom_call.1} parent=19 // pred_region
          %s205 = sand.u32 %s16, 1
          %s206 = scalar_lea.sflag [#allocation6], %s205
          %s207 = sand.u32 %s101, 1
          %s208 = smul.addr %s207, 2
          %s209 = scalar_lea.vmem [#allocation7], %s208
          %s210 = smul.u32 2, %s24
          %s212 = ssub.s32 32, 32
          %213 = vsyncadd %s206, %s212
          %s214 = smul.addr %s210, 16
          %s215 = scalar_lea.hbm %s2, %s214
          %s217 = sshll.u32 %s209, 4
          %s218 = int_to_ptr.vmem [resolvable:$true] %s217
          %220 = dma.hbm_to_vmem [thread:$0]  %s215, 32, %s218, %s206
        $region28: #{tpu_custom_call.1} parent=19 // pred_fallthru
          _
      $region20: #{tpu_custom_call.1} parent=5 // pred_fallthru
        _
      %p221 = scmp.le.s32.totalorder 1, %s16
      %p222 = scmp.lt.s32.totalorder %s16, 3
      %p223 = pnand %p221, %p222
      %p224 = pneg %p223
      // Predicated region
      $region29: #{tpu_custom_call.1} parent=5 // pred_check
        _
      $region30: #{tpu_custom_call.1} parent=5 // pred_check_branch
        %226 = sbr.rel (%p223) target = $region32
      $region31: #{tpu_custom_call.1} parent=5 // pred_region
        %s227 = ssub.s32 %s16, 1
        // Predicated region
        $region33: #{tpu_custom_call.1} parent=31 // pred_check
          %p228 = pneg %p63
        $region34: #{tpu_custom_call.1} parent=31 // pred_check_branch
          %230 = sbr.rel (%p228) target = $region36
        $region35: #{tpu_custom_call.1} parent=31 // pred_region
          %231 = dma.done [#allocation3], 128
        $region36: #{tpu_custom_call.1} parent=31 // pred_fallthru
          _
        %s232 = sand.u32 %s21, 1
        %s233 = scalar_lea.sflag [#allocation6], %s232
        %s234 = sand.u32 %s78, 1
        %s235 = smul.addr %s234, 256
        %s236 = scalar_lea.vmem [#allocation5], %s235
        // Predicated region
        $region37: #{tpu_custom_call.1} parent=31 // pred_check
          %p237 = pneg %p91
        $region38: #{tpu_custom_call.1} parent=31 // pred_check_branch
          %239 = sbr.rel (%p237) target = $region40
        $region39: #{tpu_custom_call.1} parent=31 // pred_region
          %240 = dma.done %s233, 4096
        $region40: #{tpu_custom_call.1} parent=31 // pred_fallthru
          _
        %s241 = sand.u32 %s21, 1
        %s242 = scalar_lea.sflag [#allocation6], %s241
        %s243 = sand.u32 %s104, 1
        %s244 = smul.addr %s243, 2
        %s245 = scalar_lea.vmem [#allocation7], %s244
        // Predicated region
        $region41: #{tpu_custom_call.1} parent=31 // pred_check
          %p246 = pneg %p117
        $region42: #{tpu_custom_call.1} parent=31 // pred_check_branch
          %248 = sbr.rel (%p246) target = $region44
        $region43: #{tpu_custom_call.1} parent=31 // pred_region
          %249 = dma.done %s242, 32
        $region44: #{tpu_custom_call.1} parent=31 // pred_fallthru
          _
        %p250 = pneg %p63
        %p251 = pneg %p60
        %s252 = sand.u32 %s21, 1
        %s253 = scalar_lea.sflag [#allocation6], %s252
        %s254 = sand.u32 %s78, 1
        %s255 = smul.addr %s254, 256
        %s256 = scalar_lea.vmem [#allocation5], %s255
        %p257 = pneg %p91
        %p258 = pneg %p88
        %s259 = sand.u32 %s21, 1
        %s260 = scalar_lea.sflag [#allocation6], %s259
        %s261 = sand.u32 %s104, 1
        %s262 = smul.addr %s261, 2
        %s263 = scalar_lea.vmem [#allocation7], %s262
        %p264 = pneg %p117
        %p265 = pneg %p114
        %p266 = pneg %p145
        %p267 = pneg %p142
        %s268 = sand.u32 %s132, 1
        %s269 = scalar_lea.sflag [#allocation4], %s268
        %s270 = sand.u32 %s132, 1
        %s271 = smul.addr %s270, 16
        %s272 = scalar_lea.vmem [#allocation8], %s271
        %s273 = smul.u32 16, %s28
        %s274 = smul.u32 2, %s27
        %s275 = smul.u32 2, %s27
        %s276 = smul.u32 2, %s27
        %p277 = scmp.eq.s32.totalorder %s28, 0
        // Predicated region
        $region45: #{tpu_custom_call.1} parent=31 // pred_check
          %p278 = pneg %p277
        $region46: #{tpu_custom_call.1} parent=31 // pred_check_branch
          %280 = sbr.rel (%p278) target = $region48
        $region47: #{tpu_custom_call.1} parent=31 // pred_region
          %v281 = vld [vmem:[%s245] sm:$0x3]
          %v283 = vlaneseq
          %v284 = vshrl.u32 %v283, 7
          %v285 = vsub.s32 0, %v284
          %v286 = vrot.slane %v281, %v285
          %v287 = vlaneseq
          %v288 = vshrl.u32 %v287, 7
          %v289 = vsub.s32 1, %v288
          %v290 = vrot.slane %v281, %v289
          %293 = vst [vmem:[%s272] sm:$0xff] %v286
          %294 = vst [vmem:[%s272 + $0x8] sm:$0xff] %v290
        $region48: #{tpu_custom_call.1} parent=31 // pred_fallthru
          _
        %v295 = vld [vmem:[%s272] sm:$0xff]
        %v296 = vld [vmem:[%s272 + $0x8] sm:$0xff]
        %v297 = vld [vmem:[#allocation2] sm:$0xff]
        %v298 = vld [vmem:[%s236] sm:$0xff]
        %v299 = vld [vmem:[%s236 + $0x8] sm:$0xff]
        %v300 = vld [vmem:[%s236 + $0x10] sm:$0xff]
        %v301 = vld [vmem:[%s236 + $0x18] sm:$0xff]
        %v302 = vld [vmem:[%s236 + $0x20] sm:$0xff]
        %v303 = vld [vmem:[%s236 + $0x28] sm:$0xff]
        %v304 = vld [vmem:[%s236 + $0x30] sm:$0xff]
        %v305 = vld [vmem:[%s236 + $0x38] sm:$0xff]
        %v306 = vld [vmem:[%s236 + $0x40] sm:$0xff]
        %v307 = vld [vmem:[%s236 + $0x48] sm:$0xff]
        %v308 = vld [vmem:[%s236 + $0x50] sm:$0xff]
        %v309 = vld [vmem:[%s236 + $0x58] sm:$0xff]
        %v310 = vld [vmem:[%s236 + $0x60] sm:$0xff]
        %v311 = vld [vmem:[%s236 + $0x68] sm:$0xff]
        %v312 = vld [vmem:[%s236 + $0x70] sm:$0xff]
        %v313 = vld [vmem:[%s236 + $0x78] sm:$0xff]
        %v314 = vld [vmem:[%s236 + $0x80] sm:$0xff]
        %v315 = vld [vmem:[%s236 + $0x88] sm:$0xff]
        %v316 = vld [vmem:[%s236 + $0x90] sm:$0xff]
        %v317 = vld [vmem:[%s236 + $0x98] sm:$0xff]
        %v318 = vld [vmem:[%s236 + $0xa0] sm:$0xff]
        %v319 = vld [vmem:[%s236 + $0xa8] sm:$0xff]
        %v320 = vld [vmem:[%s236 + $0xb0] sm:$0xff]
        %v321 = vld [vmem:[%s236 + $0xb8] sm:$0xff]
        %v322 = vld [vmem:[%s236 + $0xc0] sm:$0xff]
        %v323 = vld [vmem:[%s236 + $0xc8] sm:$0xff]
        %v324 = vld [vmem:[%s236 + $0xd0] sm:$0xff]
        %v325 = vld [vmem:[%s236 + $0xd8] sm:$0xff]
        %v326 = vld [vmem:[%s236 + $0xe0] sm:$0xff]
        %v327 = vld [vmem:[%s236 + $0xe8] sm:$0xff]
        %v328 = vld [vmem:[%s236 + $0xf0] sm:$0xff]
        %v329 = vld [vmem:[%s236 + $0xf8] sm:$0xff]
        %330 = vmatprep.subr.mxu0 %v329
        %331 = vmatpush1.msra.mxu0 %v328
        %332 = vmatprep.subr.mxu0 %v327
        %333 = vmatpush1.msra.mxu0 %v326
        %334 = vmatprep.subr.mxu0 %v325
        %335 = vmatpush1.msra.mxu0 %v324
        %336 = vmatprep.subr.mxu0 %v323
        %337 = vmatpush1.msra.mxu0 %v322
        %338 = vmatprep.subr.mxu0 %v321
        %339 = vmatpush1.msra.mxu0 %v320
        %340 = vmatprep.subr.mxu0 %v319
        %341 = vmatpush1.msra.mxu0 %v318
        %342 = vmatprep.subr.mxu0 %v317
        %343 = vmatpush1.msra.mxu0 %v316
        %344 = vmatprep.subr.mxu0 %v315
        %345 = vmatpush1.msra.mxu0 %v314
        %346 = vmatprep.subr.mxu0 %v313
        %347 = vmatpush1.msra.mxu0 %v312
        %348 = vmatprep.subr.mxu0 %v311
        %349 = vmatpush1.msra.mxu0 %v310
        %350 = vmatprep.subr.mxu0 %v309
        %351 = vmatpush1.msra.mxu0 %v308
        %352 = vmatprep.subr.mxu0 %v307
        %353 = vmatpush1.msra.mxu0 %v306
        %354 = vmatprep.subr.mxu0 %v305
        %355 = vmatpush1.msra.mxu0 %v304
        %356 = vmatprep.subr.mxu0 %v303
        %357 = vmatpush1.msra.mxu0 %v302
        %358 = vmatprep.subr.mxu0 %v301
        %359 = vmatpush1.msra.mxu0 %v300
        %360 = vmatprep.subr.mxu0 %v299
        %361 = vmatpush1.msra.mxu0 %v298
        %362 = vmatprep.subr.mxu0 0.0
        %363 = vmatpush2.msra.mxu0 0.0
        %364 = vmatprep.subr.mxu0 0.0
        %365 = vmatpush2.msra.mxu0 0.0
        %366 = vmatprep.subr.mxu0 0.0
        %367 = vmatpush2.msra.mxu0 0.0
        %368 = vmatprep.subr.mxu0 0.0
        %369 = vmatpush2.msra.mxu0 0.0
        %370 = vmatprep.subr.mxu0 0.0
        %371 = vmatpush2.msra.mxu0 0.0
        %372 = vmatprep.subr.mxu0 0.0
        %373 = vmatpush2.msra.mxu0 0.0
        %374 = vmatprep.subr.mxu0 0.0
        %375 = vmatpush2.msra.mxu0 0.0
        %376 = vmatprep.subr.mxu0 0.0
        %377 = vmatpush2.msra.mxu0 0.0
        %378 = vmatprep.subr.mxu0 0.0
        %379 = vmatpush2.msra.mxu0 0.0
        %380 = vmatprep.subr.mxu0 0.0
        %381 = vmatpush2.msra.mxu0 0.0
        %382 = vmatprep.subr.mxu0 0.0
        %383 = vmatpush2.msra.mxu0 0.0
        %384 = vmatprep.subr.mxu0 0.0
        %385 = vmatpush2.msra.mxu0 0.0
        %386 = vmatprep.subr.mxu0 0.0
        %387 = vmatpush2.msra.mxu0 0.0
        %388 = vmatprep.subr.mxu0 0.0
        %389 = vmatpush2.msra.mxu0 0.0
        %390 = vmatprep.subr.mxu0 0.0
        %391 = vmatpush2.msra.mxu0 0.0
        %392 = vmatprep.subr.mxu0 0.0
        %393 = vmatpush2.msra.mxu0 0.0
        %394 = vmatprep.mubr.f32.mxu0 0.0
        %395 = vmatmul.mubr.f32.gmra.mxu0 %v297
        %v396 = vpop.f32.mrf.mxu0
        %v397 = vadd.f32 0.0, %v396
        %v398 = vpop.f32.mrf.mxu0
        %v399 = vadd.f32 0.0, %v398
        %400 = vdwg.mxu0
        %v401 = vadd.f32 %v295, %v397
        %v402 = vadd.f32 %v296, %v399
        %403 = vst [vmem:[%s272] sm:$0xff] %v401
        %404 = vst [vmem:[%s272 + $0x8] sm:$0xff] %v402
        %s405 = sand.u32 %s132, 1
        %s406 = scalar_lea.sflag [#allocation4], %s405
        %s407 = sand.u32 %s132, 1
        %s408 = smul.addr %s407, 16
        %s409 = scalar_lea.vmem [#allocation8], %s408
        // Predicated region
        $region49: #{tpu_custom_call.1} parent=31 // pred_check
          %p410 = pneg %p142
        $region50: #{tpu_custom_call.1} parent=31 // pred_check_branch
          %412 = sbr.rel (%p410) target = $region52
        $region51: #{tpu_custom_call.1} parent=31 // pred_region
          %s413 = smul.u32 2, %s27
          %s415 = ssub.s32 256, 256
          %416 = vsyncadd %s406, %s415
          %s417 = smul.addr %s26, 4
          %s418 = sadd.s32 %s413, %s417
          %s419 = smul.addr %s418, 128
          %s420 = scalar_lea.hbm %s3, %s419
          %s422 = sshll.u32 %s409, 4
          %s423 = int_to_ptr.vmem [resolvable:$true] %s422
          %425 = dma.vmem_to_hbm [thread:$0]  %s423, 256, %s420, %s406
        $region52: #{tpu_custom_call.1} parent=31 // pred_fallthru
          _
      $region32: #{tpu_custom_call.1} parent=5 // pred_fallthru
        _
      %p426 = scmp.le.s32.totalorder 2, %s16
      // Predicated region
      $region53: #{tpu_custom_call.1} parent=5 // pred_check
        %p427 = pneg %p426
      $region54: #{tpu_custom_call.1} parent=5 // pred_check_branch
        %429 = sbr.rel (%p427) target = $region56
      $region55: #{tpu_custom_call.1} parent=5 // pred_region
        %s430 = ssub.s32 %s16, 2
        // Predicated region
        $region57: #{tpu_custom_call.1} parent=55 // pred_check
          %p431 = pneg %p148
        $region58: #{tpu_custom_call.1} parent=55 // pred_check_branch
          %433 = sbr.rel (%p431) target = $region60
        $region59: #{tpu_custom_call.1} parent=55 // pred_region
          %s434 = sand.u32 %s133, 1
          %s435 = scalar_lea.sflag [#allocation4], %s434
          %s436 = sand.u32 %s133, 1
          %s437 = smul.addr %s436, 16
          %s438 = scalar_lea.vmem [#allocation8], %s437
          %439 = dma.done %s435, 256
        $region60: #{tpu_custom_call.1} parent=55 // pred_fallthru
          _
      $region56: #{tpu_custom_call.1} parent=5 // pred_fallthru
        _
    $region6: #{tpu_custom_call.1} parent=1 // loop_footer
      %s20 = sadd.s32 1, %s16
    $region7: #{tpu_custom_call.1} parent=1 // loop_footer_branch
      %15 = sbr.rel target = $region3
    $region8: #{tpu_custom_call.1} parent=1 // loop_exit
      _
    %440 = vsyncpa [#allocation3], 1
    %s441 = scalar_lea.sflag [#allocation3], 1
    %442 = vsyncpa %s441, 1
    %443 = vsyncpa [#allocation6], 1
    %s444 = scalar_lea.sflag [#allocation6], 1
    %445 = vsyncpa %s444, 1
    %446 = vsyncpa [#allocation4], 1
    %s447 = scalar_lea.sflag [#allocation4], 1
    %448 = vsyncpa %s447, 1

</llo_original>
